<compile_context>
chip_gen: v6e
topology: v6e:2x2x1
jax: 0.10.0
libtpu: 0.0.40
codegen_flags: <defaults>
</compile_context>

<pallas_src>
import jax
import jax.numpy as jnp
from jax.experimental import pallas as pl
from jax.experimental.pallas import tpu as pltpu

_NEG_MASK = -1e30  # bias for padded classes -> exp() underflows to exactly 0


def _round_up(x, m):
    return ((x + m - 1) // m) * m


def _cdiv(a, b):
    return (a + b - 1) // b


def _vmem_capacity_bytes():
    """Generation-aware VMEM capacity (v5e/v6e: 128 MiB, v7x: 64 MiB)."""
    try:
        info = pltpu.get_tpu_info()
        cap = int(getattr(info, "vmem_capacity_bytes", 64 << 20))
        if cap > 0:
            return cap
    except Exception:
        pass
    return 64 << 20  # conservative fallback (v7x per-core size)


def _wide_deep_kernel(xw_ref, xd_ref, wd1_ref, bd1_ref, ww_ref, wd2_ref,
                      bout_ref, out_ref):
    # ---- deep dense trunk: Linear(dense_dim -> hidden) + LeakyReLU(0.01) ----
    h = jnp.dot(xd_ref[...], wd1_ref[...], preferred_element_type=jnp.float32)
    h = h + bd1_ref[...]
    h = jnp.where(h > 0, h, 0.01 * h)          # LeakyReLU, default slope 0.01
    # (Dropout is identity in eval mode.)

    # ---- output projection: two dots into one shared f32 accumulator ----
    # (no lane-axis concat -> no cross-lane relayout or extra VMEM temp)
    logits = jnp.dot(xw_ref[...], ww_ref[...], preferred_element_type=jnp.float32)
    logits = logits + jnp.dot(h.astype(wd2_ref.dtype), wd2_ref[...],
                              preferred_element_type=jnp.float32)
    logits = logits + bout_ref[...]            # padded classes carry -1e30 bias

    # ---- softmax over the lane-padded class axis (padded classes -> 0) ----
    m = jnp.max(logits, axis=1, keepdims=True)
    e = jnp.exp(logits - m)
    denom = jnp.sum(e, axis=1, keepdims=True)
    out_ref[...] = (e * pl.reciprocal(denom, approx=True)).astype(out_ref.dtype)


def wide_deep_forward(x_wide, x_deep, params, *, block_batch=4096,
                      compute_dtype=None, out_dtype=None):
    """WideDeepModel forward (eval mode) as a batch-tiled Pallas kernel.

    compute_dtype defaults to bfloat16 on every generation (the kernel is
    bandwidth-bound; MXU accumulation and the softmax epilogue stay f32).
    """
    if compute_dtype is None:
        compute_dtype = jnp.bfloat16
    if out_dtype is None:
        out_dtype = compute_dtype

    ww, bw = params["ww"], params["bw"]
    wd1, bd1 = params["wd1"], params["bd1"]
    wd2, bd2 = params["wd2"], params["bd2"]

    B, wide_dim = x_wide.shape
    dense_dim = x_deep.shape[1]
    hidden = wd1.shape[1]
    output_dim = ww.shape[1]

    # ---- parameter packing: lane-padded classes, separate wide/deep W ----
    out_pad = _round_up(max(output_dim, 128), 128)
    ww_p = jnp.pad(ww, ((0, 0), (0, out_pad - output_dim))).astype(compute_dtype)
    wd2_p = jnp.pad(wd2, ((0, 0), (0, out_pad - output_dim))).astype(compute_dtype)
    b_out = (bw + bd2).astype(jnp.float32)                   # (1, out)
    b_out = jnp.pad(b_out, ((0, 0), (0, out_pad - output_dim)),
                    constant_values=_NEG_MASK)
    wd1_c = wd1.astype(compute_dtype)
    bd1_f = bd1.astype(jnp.float32)            # biases stay f32 (tiny, epilogue)

    # Ideally the caller supplies activations already in compute_dtype; the
    # casts below are no-ops when dtypes already match.
    xw = x_wide.astype(compute_dtype)
    xd = x_deep.astype(compute_dtype)

    # ---- generation-aware VMEM budget -> batch tile size ----
    act_bytes = jnp.dtype(compute_dtype).itemsize
    out_bytes = jnp.dtype(out_dtype).itemsize
    # Resident weights/biases (counted twice: Pallas double-buffers inputs even
    # when the index_map is grid-invariant; revisit detection skips the re-DMA).
    wb = ((dense_dim * hidden + wide_dim * out_pad + hidden * out_pad) * act_bytes
          + (hidden + out_pad) * 4)
    # Per-batch-row VMEM: double-buffered activation/output tiles + f32 temps
    # (h, logits, exp) that live only inside the kernel body.
    per_row = (2 * (wide_dim + dense_dim) * act_bytes
               + 2 * out_pad * out_bytes
               + 4 * (hidden + 3 * out_pad))

    vmem_cap = _vmem_capacity_bytes()
    limit_cap = (vmem_cap * 3) // 4            # ~96 MiB on v5e/v6e, ~48 MiB on v7x

    tb_budget = max(8, int((limit_cap // 2 - 2 * wb - (2 << 20)) // per_row))
    tb = max(8, (min(block_batch, tb_budget) // 8) * 8)
    if tb >= B:
        tb = B                                  # single tile == full batch dim
    n_tiles = _cdiv(B, tb)
    if n_tiles == 1 and B >= 512:
        # v7x megacore: keep both TensorCores busy with >= 2 grid tiles.
        tb = _round_up(_cdiv(B, 2), 8)
        n_tiles = _cdiv(B, tb)
    # Ragged last tile (B % tb != 0) is handled by Pallas: OOB reads are
    # unspecified, OOB writes are masked -- no wrapper-side batch padding.

    est = 2 * wb + tb * per_row
    vmem_limit = int(min(max(2 * est, 16 << 20), limit_cap))

    out = pl.pallas_call(
        _wide_deep_kernel,
        out_shape=jax.ShapeDtypeStruct((B, out_pad), out_dtype),
        grid=(n_tiles,),
        in_specs=[
            pl.BlockSpec((tb, wide_dim), lambda i: (i, 0)),          # x_wide tile
            pl.BlockSpec((tb, dense_dim), lambda i: (i, 0)),         # x_deep tile
            pl.BlockSpec((dense_dim, hidden), lambda i: (0, 0)),     # Wd1 (resident)
            pl.BlockSpec((1, hidden), lambda i: (0, 0)),             # bd1 (resident)
            pl.BlockSpec((wide_dim, out_pad), lambda i: (0, 0)),     # Ww (lane-padded)
            pl.BlockSpec((hidden, out_pad), lambda i: (0, 0)),       # Wd2 (lane-padded)
            pl.BlockSpec((1, out_pad), lambda i: (0, 0)),            # fused bias
        ],
        out_specs=pl.BlockSpec((tb, out_pad), lambda i: (i, 0)),
        compiler_params=pltpu.CompilerParams(
            dimension_semantics=("parallel",),
            vmem_limit_bytes=vmem_limit),
    )(xw, xd, wd1_c, bd1_f, ww_p, wd2_p, b_out)

    # TODO(synk): for production wide_dim (10k+ features) add a trailing
    # "arbitrary" K-reduction grid axis over wide_dim with an f32 (tb, out_pad)
    # scratch accumulator (pl.when init/finalize), and mark the grid-invariant
    # weight specs pipeline_mode=pl.Buffered(1) to reclaim their second buffer.
    # The final slice only reads the tiny real class columns; the kernel itself
    # writes a lane-dense (tb, 128) slab to keep stores unmasked.
    return out[:, :output_dim]


def init_params(key, wide_dim, dense_dim, hidden, output_dim):
    """Deterministic synthetic parameters (shapes match the torch module)."""
    ks = jax.random.split(key, 6)
    scale = 0.1
    return {
        # wide model: Linear(wide_dim, output_dim)
        "ww":  scale * jax.random.normal(ks[0], (wide_dim, output_dim), jnp.float32),
        "bw":  scale * jax.random.normal(ks[1], (1, output_dim), jnp.float32),
        # deep_dense_model: Linear(dense_dim, hidden) + LeakyReLU
        "wd1": scale * jax.random.normal(ks[2], (dense_dim, hidden), jnp.float32),
        "bd1": scale * jax.random.normal(ks[3], (1, hidden), jnp.float32),
        # appended head: Linear(hidden, output_dim)
        "wd2": scale * jax.random.normal(ks[4], (hidden, output_dim), jnp.float32),
        "bd2": scale * jax.random.normal(ks[5], (1, output_dim), jnp.float32),
    }


def reference_forward(x_wide, x_deep, p):
    """Plain-JAX reference of the same forward pass (module semantics)."""
    y_wide = x_wide @ p["ww"] + p["bw"]
    h = x_deep @ p["wd1"] + p["bd1"]
    h = jnp.where(h > 0, h, 0.01 * h)
    y_deep = h @ p["wd2"] + p["bd2"]
    return jax.nn.softmax(y_wide + y_deep, axis=1)


if __name__ == "__main__":
    B, wide_dim, dense_dim, hidden, output_dim = 8, 16, 32, 64, 2

    key = jax.random.PRNGKey(0)
    k_xw, k_xd, k_p = jax.random.split(key, 3)

    x_wide = jax.random.normal(k_xw, (B, wide_dim), jnp.float32)
    x_deep = jax.random.normal(k_xd, (B, dense_dim), jnp.float32)
    params = init_params(k_p, wide_dim, dense_dim, hidden, output_dim)

    ref = reference_forward(x_wide, x_deep, params)

    # f32 path: tight check (approx reciprocal -> ~1e-3 relative on probs).
    out_f32 = jax.block_until_ready(
        wide_deep_forward(x_wide, x_deep, params, compute_dtype=jnp.float32))
    assert out_f32.shape == (B, output_dim)
    assert out_f32.dtype == jnp.float32
    assert jnp.allclose(out_f32, ref, atol=3e-3, rtol=3e-3)

    # Default path (bf16 activations/weights/output, f32 accumulation): loose check.
    out_bf16 = jax.block_until_ready(wide_deep_forward(x_wide, x_deep, params))
    assert out_bf16.shape == (B, output_dim)
    assert jnp.allclose(out_bf16.astype(jnp.float32), ref, atol=5e-2, rtol=5e-2)

    print("KERNEL_OK")
</pallas_src>

<mosaic_0001>
module attributes {stable_mosaic.version = 11 : i64} {
  func.func @_wide_deep_kernel(%arg0: i32, %arg1: memref<8x16xf32, #tpu.memory_space<vmem>>, %arg2: memref<8x32xf32, #tpu.memory_space<vmem>>, %arg3: memref<32x64xf32, #tpu.memory_space<vmem>>, %arg4: memref<1x64xf32, #tpu.memory_space<vmem>>, %arg5: memref<16x128xf32, #tpu.memory_space<vmem>>, %arg6: memref<64x128xf32, #tpu.memory_space<vmem>>, %arg7: memref<1x128xf32, #tpu.memory_space<vmem>>, %arg8: memref<8x128xf32, #tpu.memory_space<vmem>>) attributes {dimension_semantics = [#tpu.dimension_semantics<parallel>], iteration_bounds = array<i64: 1>, scalar_prefetch = 0 : i64, scratch_operands = 0 : i64, tpu.core_type = #tpu.core_type<tc>, window_params = [{transform_indices = @transform_0, window_bounds = array<i64: 8, 16>}, {transform_indices = @transform_1, window_bounds = array<i64: 8, 32>}, {pipeline_mode = #tpu.pipeline_mode<synchronous>, transform_indices = @transform_2, window_bounds = array<i64: 32, 64>}, {pipeline_mode = #tpu.pipeline_mode<synchronous>, transform_indices = @transform_3, window_bounds = array<i64: 1, 64>}, {pipeline_mode = #tpu.pipeline_mode<synchronous>, transform_indices = @transform_4, window_bounds = array<i64: 16, 128>}, {pipeline_mode = #tpu.pipeline_mode<synchronous>, transform_indices = @transform_5, window_bounds = array<i64: 64, 128>}, {pipeline_mode = #tpu.pipeline_mode<synchronous>, transform_indices = @transform_6, window_bounds = array<i64: 1, 128>}, {transform_indices = @transform_7, window_bounds = array<i64: 8, 128>}]} {
    %c0 = arith.constant 0 : index
    %c0_0 = arith.constant 0 : index
    %0 = vector.load %arg2[%c0, %c0_0] : memref<8x32xf32, #tpu.memory_space<vmem>>, vector<8x32xf32>
    %c0_1 = arith.constant 0 : index
    %c0_2 = arith.constant 0 : index
    %1 = vector.load %arg3[%c0_1, %c0_2] : memref<32x64xf32, #tpu.memory_space<vmem>>, vector<32x64xf32>
    %cst = arith.constant dense<0.000000e+00> : vector<8x64xf32>
    %2 = tpu.matmul %0, %1, %cst {dimension_numbers = #tpu.dot_dimension_numbers<[1], [0], [0], [1], [0, 0, 1, 1], [], []>} : vector<8x32xf32>, vector<32x64xf32>, vector<8x64xf32> -> vector<8x64xf32>
    %c0_3 = arith.constant 0 : index
    %c0_4 = arith.constant 0 : index
    %3 = vector.load %arg4[%c0_3, %c0_4] : memref<1x64xf32, #tpu.memory_space<vmem>>, vector<1x64xf32>
    %4 = vector.broadcast %3 : vector<1x64xf32> to vector<8x64xf32>
    %5 = arith.addf %2, %4 : vector<8x64xf32>
    %cst_5 = arith.constant 0.000000e+00 : f32
    %6 = vector.broadcast %cst_5 : f32 to vector<8x64xf32>
    %7 = arith.cmpf ogt, %5, %6 : vector<8x64xf32>
    %cst_6 = arith.constant 0.00999999977 : f32
    %8 = vector.broadcast %cst_6 : f32 to vector<8x64xf32>
    %9 = arith.mulf %8, %5 : vector<8x64xf32>
    %10 = arith.select %7, %5, %9 : vector<8x64xi1>, vector<8x64xf32>
    %c0_7 = arith.constant 0 : index
    %c0_8 = arith.constant 0 : index
    %11 = vector.load %arg1[%c0_7, %c0_8] : memref<8x16xf32, #tpu.memory_space<vmem>>, vector<8x16xf32>
    %c0_9 = arith.constant 0 : index
    %c0_10 = arith.constant 0 : index
    %12 = vector.load %arg5[%c0_9, %c0_10] : memref<16x128xf32, #tpu.memory_space<vmem>>, vector<16x128xf32>
    %cst_11 = arith.constant dense<0.000000e+00> : vector<8x128xf32>
    %13 = tpu.matmul %11, %12, %cst_11 {dimension_numbers = #tpu.dot_dimension_numbers<[1], [0], [0], [1], [0, 0, 1, 1], [], []>} : vector<8x16xf32>, vector<16x128xf32>, vector<8x128xf32> -> vector<8x128xf32>
    %c0_12 = arith.constant 0 : index
    %c0_13 = arith.constant 0 : index
    %14 = vector.load %arg6[%c0_12, %c0_13] : memref<64x128xf32, #tpu.memory_space<vmem>>, vector<64x128xf32>
    %cst_14 = arith.constant dense<0.000000e+00> : vector<8x128xf32>
    %15 = tpu.matmul %10, %14, %cst_14 {dimension_numbers = #tpu.dot_dimension_numbers<[1], [0], [0], [1], [0, 0, 1, 1], [], []>} : vector<8x64xf32>, vector<64x128xf32>, vector<8x128xf32> -> vector<8x128xf32>
    %16 = arith.addf %13, %15 : vector<8x128xf32>
    %c0_15 = arith.constant 0 : index
    %c0_16 = arith.constant 0 : index
    %17 = vector.load %arg7[%c0_15, %c0_16] : memref<1x128xf32, #tpu.memory_space<vmem>>, vector<1x128xf32>
    %18 = vector.broadcast %17 : vector<1x128xf32> to vector<8x128xf32>
    %19 = arith.addf %16, %18 : vector<8x128xf32>
    %cst_17 = arith.constant dense<0xFF800000> : vector<8xf32>
    %20 = vector.multi_reduction <maximumf>, %19, %cst_17 [1] : vector<8x128xf32> to vector<8xf32>
    %21 = vector.shape_cast %20 : vector<8xf32> to vector<8x1xf32>
    %22 = vector.broadcast %21 : vector<8x1xf32> to vector<8x128xf32>
    %23 = arith.subf %19, %22 : vector<8x128xf32>
    %24 = math.exp %23 : vector<8x128xf32>
    %cst_18 = arith.constant dense<0.000000e+00> : vector<8xf32>
    %25 = vector.multi_reduction <add>, %24, %cst_18 [1] : vector<8x128xf32> to vector<8xf32>
    %26 = vector.shape_cast %25 : vector<8xf32> to vector<8x1xf32>
    %27 = tpu.reciprocal %26 {approx = true} : vector<8x1xf32> -> vector<8x1xf32>
    %28 = vector.broadcast %27 : vector<8x1xf32> to vector<8x128xf32>
    %29 = arith.mulf %24, %28 : vector<8x128xf32>
    %c0_19 = arith.constant 0 : index
    %c0_20 = arith.constant 0 : index
    %30 = vector.load %arg8[%c0_19, %c0_20] : memref<8x128xf32, #tpu.memory_space<vmem>>, vector<8x128xf32>
    tpu.vector_store %arg8[%c0_19, %c0_20], %29 {strides = array<i32>} : memref<8x128xf32, #tpu.memory_space<vmem>>, vector<8x128xf32>,
    return
  }
  func.func @transform_0(%arg0: i32) -> (i32, i32) {
    %c0_i32 = arith.constant 0 : i32
    %c0_i32_0 = arith.constant 0 : i32
    return %arg0, %c0_i32 : i32, i32
  }
  func.func @transform_1(%arg0: i32) -> (i32, i32) {
    %c0_i32 = arith.constant 0 : i32
    %c0_i32_0 = arith.constant 0 : i32
    return %arg0, %c0_i32 : i32, i32
  }
  func.func @transform_2(%arg0: i32) -> (i32, i32) {
    %c0_i32 = arith.constant 0 : i32
    %c0_i32_0 = arith.constant 0 : i32
    %c0_i32_1 = arith.constant 0 : i32
    return %c0_i32, %c0_i32_0 : i32, i32
  }
  func.func @transform_3(%arg0: i32) -> (i32, i32) {
    %c0_i32 = arith.constant 0 : i32
    %c0_i32_0 = arith.constant 0 : i32
    %c0_i32_1 = arith.constant 0 : i32
    return %c0_i32, %c0_i32_0 : i32, i32
  }
  func.func @transform_4(%arg0: i32) -> (i32, i32) {
    %c0_i32 = arith.constant 0 : i32
    %c0_i32_0 = arith.constant 0 : i32
    %c0_i32_1 = arith.constant 0 : i32
    return %c0_i32, %c0_i32_0 : i32, i32
  }
  func.func @transform_5(%arg0: i32) -> (i32, i32) {
    %c0_i32 = arith.constant 0 : i32
    %c0_i32_0 = arith.constant 0 : i32
    %c0_i32_1 = arith.constant 0 : i32
    return %c0_i32, %c0_i32_0 : i32, i32
  }
  func.func @transform_6(%arg0: i32) -> (i32, i32) {
    %c0_i32 = arith.constant 0 : i32
    %c0_i32_0 = arith.constant 0 : i32
    %c0_i32_1 = arith.constant 0 : i32
    return %c0_i32, %c0_i32_0 : i32, i32
  }
  func.func @transform_7(%arg0: i32) -> (i32, i32) {
    %c0_i32 = arith.constant 0 : i32
    %c0_i32_0 = arith.constant 0 : i32
    return %arg0, %c0_i32 : i32, i32
  }
}

</mosaic_0001>

<llo_original>
// kernel: tpu_custom_call.1
$region0: #{tpu_custom_call.1}
  #allocation0 [shape = 'u32[]', space=smem, size = 0x4, offset = 0x4, fixed_abs, tag = 'smem constant byte address 0x4 - core index']
  #allocation1 [shape = 'u32[144,128]{1,0:T(1,128)}', space=vmem, size = 0x12000, scoped, tag = 'internal scratch']
  %s0 = inlined_call_operand.hbm [shape: f32[8,16], index: 0, kind: input, shape index: {}]
  %s1 = inlined_call_operand.hbm [shape: f32[8,32], index: 1, kind: input, shape index: {}]
  %s2 = inlined_call_operand.hbm [shape: f32[32,64], index: 2, kind: input, shape index: {}]
  %s3 = inlined_call_operand.vmem [shape: f32[1,64], index: 3, kind: input, shape index: {}]
  %s4 = inlined_call_operand.hbm [shape: f32[16,128], index: 4, kind: input, shape index: {}]
  %s5 = inlined_call_operand.hbm [shape: f32[64,128], index: 5, kind: input, shape index: {}]
  %s6 = inlined_call_operand.vmem [shape: f32[1,128], index: 6, kind: input, shape index: {}]
  %s7 = inlined_call_operand.hbm [shape: f32[8,128], index: 7, kind: output, shape index: {}]
  %s8 = sld [smem:[#allocation0]]
  $region58: #{tpu_custom_call.1} parent=0
    _
  %s10 = ssub.s32 1, %s8
  %s11 = scalar_select 0, %s10, %s8
  $region1: #{tpu_custom_call.1} parent=0
    #allocation2 [shape = 'u8[4096]{0}', space=vmem, size = 0x1000, scoped, tag = 'input window, operand 0, single buffered']
    #allocation3 [shape = 's32[1]{0}', space=sflag, size = 0x4, scoped, tag = 'scoped memory for tpu_custom_call.1']
    #allocation4 [shape = 's32[1]{0}', space=sflag, size = 0x4, scoped, tag = 'scoped memory for tpu_custom_call.1']
    #allocation5 [shape = 'u8[4096]{0}', space=vmem, size = 0x1000, scoped, tag = 'input window, operand 1, single buffered']
    #allocation6 [shape = 's32[1]{0}', space=sflag, size = 0x4, scoped, tag = 'scoped memory for tpu_custom_call.1']
    #allocation7 [shape = 'u8[16384]{0}', space=vmem, size = 0x4000, scoped, tag = 'input window, operand 2, single buffered']
    #allocation8 [shape = 'u8[8192]{0}', space=vmem, size = 0x2000, scoped, tag = 'input window, operand 4, single buffered']
    #allocation9 [shape = 's32[1]{0}', space=sflag, size = 0x4, scoped, tag = 'scoped memory for tpu_custom_call.1']
    #allocation10 [shape = 'u8[32768]{0}', space=vmem, size = 0x8000, scoped, tag = 'input window, operand 5, single buffered']
    #allocation11 [shape = 'u8[4096]{0}', space=vmem, size = 0x1000, scoped, tag = 'output window, operand 0, single buffered']
    %12 = vsyncpa [#allocation3], 0
    %13 = vsyncpa [#allocation6], 0
    %14 = vsyncpa [#allocation9], 0
    %15 = vsyncpa [#allocation4], 0
    // Predicated region
    $region2: #{tpu_custom_call.1} parent=1 // pred_check
      _
    $region3: #{tpu_custom_call.1} parent=1 // pred_check_branch
      %17 = sbr.rel (0) target = $region5
    $region4: #{tpu_custom_call.1} parent=1 // pred_region
      %s19 = ssub.s32 128, 128
      %20 = vsyncadd [#allocation3], %s19
      %s22 = sshll.u32 [#allocation2], 4
      %s23 = int_to_ptr.vmem [resolvable:$true] %s22
      %25 = dma.hbm_to_vmem [thread:$0]  %s0, 128, %s23, [#allocation3]
    $region5: #{tpu_custom_call.1} parent=1 // pred_fallthru
      _
    // Predicated region
    $region6: #{tpu_custom_call.1} parent=1 // pred_check
      _
    $region7: #{tpu_custom_call.1} parent=1 // pred_check_branch
      %27 = sbr.rel (0) target = $region9
    $region8: #{tpu_custom_call.1} parent=1 // pred_region
      %s29 = ssub.s32 128, 128
      %30 = vsyncadd [#allocation6], %s29
      %s32 = sshll.u32 [#allocation5], 4
      %s33 = int_to_ptr.vmem [resolvable:$true] %s32
      %35 = dma.hbm_to_vmem [thread:$0]  %s1, 128, %s33, [#allocation6]
    $region9: #{tpu_custom_call.1} parent=1 // pred_fallthru
      _
    // Predicated region
    $region10: #{tpu_custom_call.1} parent=1 // pred_check
      _
    $region11: #{tpu_custom_call.1} parent=1 // pred_check_branch
      %37 = sbr.rel (0) target = $region13
    $region12: #{tpu_custom_call.1} parent=1 // pred_region
      %s39 = ssub.s32 512, 512
      %40 = vsyncadd [#allocation6], %s39
      %s41 = sshll.u32 [#allocation7], 4
      %s42 = int_to_ptr.vmem [resolvable:$true] %s41
      %47 = dma.hbm_to_vmem [thread:$0]  %s2, 512, %s42, [#allocation6], 128, 128, 8
    $region13: #{tpu_custom_call.1} parent=1 // pred_fallthru
      _
    // Predicated region
    $region14: #{tpu_custom_call.1} parent=1 // pred_check
      _
    $region15: #{tpu_custom_call.1} parent=1 // pred_check_branch
      %49 = sbr.rel (0) target = $region17
    $region16: #{tpu_custom_call.1} parent=1 // pred_region
      _
    $region17: #{tpu_custom_call.1} parent=1 // pred_fallthru
      _
    // Predicated region
    $region18: #{tpu_custom_call.1} parent=1 // pred_check
      _
    $region19: #{tpu_custom_call.1} parent=1 // pred_check_branch
      %51 = sbr.rel (0) target = $region21
    $region20: #{tpu_custom_call.1} parent=1 // pred_region
      %s53 = ssub.s32 256, 256
      %54 = vsyncadd [#allocation9], %s53
      %s55 = sshll.u32 [#allocation8], 4
      %s56 = int_to_ptr.vmem [resolvable:$true] %s55
      %61 = dma.hbm_to_vmem [thread:$0]  %s4, 256, %s56, [#allocation9], 128, 128, 8
    $region21: #{tpu_custom_call.1} parent=1 // pred_fallthru
      _
    // Predicated region
    $region22: #{tpu_custom_call.1} parent=1 // pred_check
      _
    $region23: #{tpu_custom_call.1} parent=1 // pred_check_branch
      %63 = sbr.rel (0) target = $region25
    $region24: #{tpu_custom_call.1} parent=1 // pred_region
      %s65 = ssub.s32 1024, 1024
      %66 = vsyncadd [#allocation9], %s65
      %s67 = sshll.u32 [#allocation10], 4
      %s68 = int_to_ptr.vmem [resolvable:$true] %s67
      %73 = dma.hbm_to_vmem [thread:$0]  %s5, 1024, %s68, [#allocation9], 128, 128, 8
    $region25: #{tpu_custom_call.1} parent=1 // pred_fallthru
      _
    // Predicated region
    $region26: #{tpu_custom_call.1} parent=1 // pred_check
      _
    $region27: #{tpu_custom_call.1} parent=1 // pred_check_branch
      %75 = sbr.rel (0) target = $region29
    $region28: #{tpu_custom_call.1} parent=1 // pred_region
      _
    $region29: #{tpu_custom_call.1} parent=1 // pred_fallthru
      _
    // Predicated region
    $region30: #{tpu_custom_call.1} parent=1 // pred_check
      _
    $region31: #{tpu_custom_call.1} parent=1 // pred_check_branch
      %77 = sbr.rel (0) target = $region33
    $region32: #{tpu_custom_call.1} parent=1 // pred_region
      %78 = dma.done [#allocation3], 128
    $region33: #{tpu_custom_call.1} parent=1 // pred_fallthru
      _
    // Predicated region
    $region34: #{tpu_custom_call.1} parent=1 // pred_check
      _
    $region35: #{tpu_custom_call.1} parent=1 // pred_check_branch
      %80 = sbr.rel (0) target = $region37
    $region36: #{tpu_custom_call.1} parent=1 // pred_region
      %81 = dma.done [#allocation6], 128
    $region37: #{tpu_custom_call.1} parent=1 // pred_fallthru
      _
    // Predicated region
    $region38: #{tpu_custom_call.1} parent=1 // pred_check
      _
    $region39: #{tpu_custom_call.1} parent=1 // pred_check_branch
      %83 = sbr.rel (0) target = $region41
    $region40: #{tpu_custom_call.1} parent=1 // pred_region
      %84 = dma.done [#allocation6], 512
    $region41: #{tpu_custom_call.1} parent=1 // pred_fallthru
      _
    // Predicated region
    $region42: #{tpu_custom_call.1} parent=1 // pred_check
      _
    $region43: #{tpu_custom_call.1} parent=1 // pred_check_branch
      %86 = sbr.rel (0) target = $region45
    $region44: #{tpu_custom_call.1} parent=1 // pred_region
      %87 = dma.done [#allocation9], 256
    $region45: #{tpu_custom_call.1} parent=1 // pred_fallthru
      _
    // Predicated region
    $region46: #{tpu_custom_call.1} parent=1 // pred_check
      _
    $region47: #{tpu_custom_call.1} parent=1 // pred_check_branch
      %89 = sbr.rel (0) target = $region49
    $region48: #{tpu_custom_call.1} parent=1 // pred_region
      %90 = dma.done [#allocation9], 1024
    $region49: #{tpu_custom_call.1} parent=1 // pred_fallthru
      _
    %v91 = vld [vmem:[#allocation5] sm:$0xff]
    %v92 = vld [vmem:[#allocation7] sm:$0xff]
    %v93 = vld [vmem:[#allocation7 + $0x8] sm:$0xff]
    %v94 = vld [vmem:[#allocation7 + $0x10] sm:$0xff]
    %v95 = vld [vmem:[#allocation7 + $0x18] sm:$0xff]
    %v96 = vld [vmem:[%s3] sm:$0x1]
    %v98 = vlaneseq
    %v99 = vshrl.u32 %v98, 7
    %v100 = vsub.s32 0, %v99
    %v101 = vrot.slane %v96, %v100
    %vm103 = vcmask 261120
    %v105 = vsel %vm103, %v91, 0
    %107 = vmatprep.subr.mxu0 0.0
    %108 = vmatpush1.msra.mxu0 0.0
    %109 = vmatprep.subr.mxu0 0.0
    %110 = vmatpush1.msra.mxu0 0.0
    %111 = vmatprep.subr.mxu0 0.0
    %112 = vmatpush1.msra.mxu0 0.0
    %113 = vmatprep.subr.mxu0 0.0
    %114 = vmatpush1.msra.mxu0 0.0
    %115 = vmatprep.subr.mxu0 0.0
    %116 = vmatpush1.msra.mxu0 0.0
    %117 = vmatprep.subr.mxu0 0.0
    %118 = vmatpush1.msra.mxu0 0.0
    %119 = vmatprep.subr.mxu0 0.0
    %120 = vmatpush1.msra.mxu0 0.0
    %121 = vmatprep.subr.mxu0 0.0
    %122 = vmatpush1.msra.mxu0 0.0
    %123 = vmatprep.subr.mxu0 0.0
    %124 = vmatpush1.msra.mxu0 0.0
    %125 = vmatprep.subr.mxu0 0.0
    %126 = vmatpush1.msra.mxu0 0.0
    %127 = vmatprep.subr.mxu0 0.0
    %128 = vmatpush1.msra.mxu0 0.0
    %129 = vmatprep.subr.mxu0 0.0
    %130 = vmatpush1.msra.mxu0 0.0
    %131 = vmatprep.subr.mxu0 0.0
    %132 = vmatpush1.msra.mxu0 %v95
    %133 = vmatprep.subr.mxu0 0.0
    %134 = vmatpush1.msra.mxu0 %v94
    %135 = vmatprep.subr.mxu0 0.0
    %136 = vmatpush1.msra.mxu0 %v93
    %137 = vmatprep.subr.mxu0 0.0
    %138 = vmatpush1.msra.mxu0 %v92
    %139 = vmatprep.subr.mxu0 0.0
    %140 = vmatpush2.msra.mxu0 0.0
    %141 = vmatprep.subr.mxu0 0.0
    %142 = vmatpush2.msra.mxu0 0.0
    %143 = vmatprep.subr.mxu0 0.0
    %144 = vmatpush2.msra.mxu0 0.0
    %145 = vmatprep.subr.mxu0 0.0
    %146 = vmatpush2.msra.mxu0 0.0
    %147 = vmatprep.subr.mxu0 0.0
    %148 = vmatpush2.msra.mxu0 0.0
    %149 = vmatprep.subr.mxu0 0.0
    %150 = vmatpush2.msra.mxu0 0.0
    %151 = vmatprep.subr.mxu0 0.0
    %152 = vmatpush2.msra.mxu0 0.0
    %153 = vmatprep.subr.mxu0 0.0
    %154 = vmatpush2.msra.mxu0 0.0
    %155 = vmatprep.subr.mxu0 0.0
    %156 = vmatpush2.msra.mxu0 0.0
    %157 = vmatprep.subr.mxu0 0.0
    %158 = vmatpush2.msra.mxu0 0.0
    %159 = vmatprep.subr.mxu0 0.0
    %160 = vmatpush2.msra.mxu0 0.0
    %161 = vmatprep.subr.mxu0 0.0
    %162 = vmatpush2.msra.mxu0 0.0
    %163 = vmatprep.subr.mxu0 0.0
    %164 = vmatpush2.msra.mxu0 0.0
    %165 = vmatprep.subr.mxu0 0.0
    %166 = vmatpush2.msra.mxu0 0.0
    %167 = vmatprep.subr.mxu0 0.0
    %168 = vmatpush2.msra.mxu0 0.0
    %169 = vmatprep.subr.mxu0 0.0
    %170 = vmatpush2.msra.mxu0 0.0
    %171 = vmatprep.mubr.f32.mxu0 0.0
    %172 = vmatmul.mubr.f32.gmra.mxu0 %v105
    %v173 = vpop.f32.mrf.mxu0
    %v174 = vadd.f32 %v101, %v173
    %v175 = vpop.f32.mrf.mxu0
    %176 = vdwg.mxu0
    %vm177 = vcmp.gt.f32.partialorder %v174, 0.0
    %v178 = vmul.f32 %v174, 0.01
    %v179 = vsel %vm177, %v174, %v178
    %v180 = vld [vmem:[#allocation2] sm:$0xff]
    %v181 = vld [vmem:[#allocation8] sm:$0xff]
    %v182 = vld [vmem:[#allocation8 + $0x8] sm:$0xff]
    %v183 = vld [vmem:[#allocation10] sm:$0xff]
    %v184 = vld [vmem:[#allocation10 + $0x8] sm:$0xff]
    %v185 = vld [vmem:[#allocation10 + $0x10] sm:$0xff]
    %v186 = vld [vmem:[#allocation10 + $0x18] sm:$0xff]
    %v187 = vld [vmem:[#allocation10 + $0x20] sm:$0xff]
    %v188 = vld [vmem:[#allocation10 + $0x28] sm:$0xff]
    %v189 = vld [vmem:[#allocation10 + $0x30] sm:$0xff]
    %v190 = vld [vmem:[#allocation10 + $0x38] sm:$0xff]
    %vm191 = vcmask 523264
    %v193 = vsel %vm191, %v179, 0
    %195 = vmatprep.subr.mxu0 0.0
    %196 = vmatpush1.msra.mxu0 0.0
    %197 = vmatprep.subr.mxu0 0.0
    %198 = vmatpush1.msra.mxu0 0.0
    %199 = vmatprep.subr.mxu0 0.0
    %200 = vmatpush1.msra.mxu0 0.0
    %201 = vmatprep.subr.mxu0 0.0
    %202 = vmatpush1.msra.mxu0 0.0
    %203 = vmatprep.subr.mxu0 0.0
    %204 = vmatpush1.msra.mxu0 0.0
    %205 = vmatprep.subr.mxu0 0.0
    %206 = vmatpush1.msra.mxu0 0.0
    %207 = vmatprep.subr.mxu0 0.0
    %208 = vmatpush1.msra.mxu0 0.0
    %209 = vmatprep.subr.mxu0 0.0
    %210 = vmatpush1.msra.mxu0 0.0
    %211 = vmatprep.subr.mxu0 0.0
    %212 = vmatpush1.msra.mxu0 %v190
    %213 = vmatprep.subr.mxu0 0.0
    %214 = vmatpush1.msra.mxu0 %v189
    %215 = vmatprep.subr.mxu0 0.0
    %216 = vmatpush1.msra.mxu0 %v188
    %217 = vmatprep.subr.mxu0 0.0
    %218 = vmatpush1.msra.mxu0 %v187
    %219 = vmatprep.subr.mxu0 0.0
    %220 = vmatpush1.msra.mxu0 %v186
    %221 = vmatprep.subr.mxu0 0.0
    %222 = vmatpush1.msra.mxu0 %v185
    %223 = vmatprep.subr.mxu0 0.0
    %224 = vmatpush1.msra.mxu0 %v184
    %225 = vmatprep.subr.mxu0 0.0
    %226 = vmatpush1.msra.mxu0 %v183
    %227 = vmatprep.subr.mxu0 0.0
    %228 = vmatpush2.msra.mxu0 0.0
    %229 = vmatprep.subr.mxu0 0.0
    %230 = vmatpush2.msra.mxu0 0.0
    %231 = vmatprep.subr.mxu0 0.0
    %232 = vmatpush2.msra.mxu0 0.0
    %233 = vmatprep.subr.mxu0 0.0
    %234 = vmatpush2.msra.mxu0 0.0
    %235 = vmatprep.subr.mxu0 0.0
    %236 = vmatpush2.msra.mxu0 0.0
    %237 = vmatprep.subr.mxu0 0.0
    %238 = vmatpush2.msra.mxu0 0.0
    %239 = vmatprep.subr.mxu0 0.0
    %240 = vmatpush2.msra.mxu0 0.0
    %241 = vmatprep.subr.mxu0 0.0
    %242 = vmatpush2.msra.mxu0 0.0
    %243 = vmatprep.subr.mxu0 0.0
    %244 = vmatpush2.msra.mxu0 0.0
    %245 = vmatprep.subr.mxu0 0.0
    %246 = vmatpush2.msra.mxu0 0.0
    %247 = vmatprep.subr.mxu0 0.0
    %248 = vmatpush2.msra.mxu0 0.0
    %249 = vmatprep.subr.mxu0 0.0
    %250 = vmatpush2.msra.mxu0 0.0
    %251 = vmatprep.subr.mxu0 0.0
    %252 = vmatpush2.msra.mxu0 0.0
    %253 = vmatprep.subr.mxu0 0.0
    %254 = vmatpush2.msra.mxu0 0.0
    %255 = vmatprep.subr.mxu0 0.0
    %256 = vmatpush2.msra.mxu0 0.0
    %257 = vmatprep.subr.mxu0 0.0
    %258 = vmatpush2.msra.mxu0 0.0
    %259 = vmatprep.mubr.f32.mxu0 0.0
    %260 = vmatmul.mubr.f32.gmra.mxu0 %v193
    %v261 = vpop.f32.mrf.mxu0
    %v262 = vadd.f32 0.0, %v261
    %v263 = vpop.f32.mrf.mxu0
    %264 = vdwg.mxu0
    %vm265 = vcmask 130048
    %v267 = vsel %vm265, %v180, 0
    %269 = vmatprep.subr.mxu0 0.0
    %270 = vmatpush1.msra.mxu0 0.0
    %271 = vmatprep.subr.mxu0 0.0
    %272 = vmatpush1.msra.mxu0 0.0
    %273 = vmatprep.subr.mxu0 0.0
    %274 = vmatpush1.msra.mxu0 0.0
    %275 = vmatprep.subr.mxu0 0.0
    %276 = vmatpush1.msra.mxu0 0.0
    %277 = vmatprep.subr.mxu0 0.0
    %278 = vmatpush1.msra.mxu0 0.0
    %279 = vmatprep.subr.mxu0 0.0
    %280 = vmatpush1.msra.mxu0 0.0
    %281 = vmatprep.subr.mxu0 0.0
    %282 = vmatpush1.msra.mxu0 0.0
    %283 = vmatprep.subr.mxu0 0.0
    %284 = vmatpush1.msra.mxu0 0.0
    %285 = vmatprep.subr.mxu0 0.0
    %286 = vmatpush1.msra.mxu0 0.0
    %287 = vmatprep.subr.mxu0 0.0
    %288 = vmatpush1.msra.mxu0 0.0
    %289 = vmatprep.subr.mxu0 0.0
    %290 = vmatpush1.msra.mxu0 0.0
    %291 = vmatprep.subr.mxu0 0.0
    %292 = vmatpush1.msra.mxu0 0.0
    %293 = vmatprep.subr.mxu0 0.0
    %294 = vmatpush1.msra.mxu0 0.0
    %295 = vmatprep.subr.mxu0 0.0
    %296 = vmatpush1.msra.mxu0 0.0
    %297 = vmatprep.subr.mxu0 0.0
    %298 = vmatpush1.msra.mxu0 %v182
    %299 = vmatprep.subr.mxu0 0.0
    %300 = vmatpush1.msra.mxu0 %v181
    %301 = vmatprep.subr.mxu0 0.0
    %302 = vmatpush2.msra.mxu0 0.0
    %303 = vmatprep.subr.mxu0 0.0
    %304 = vmatpush2.msra.mxu0 0.0
    %305 = vmatprep.subr.mxu0 0.0
    %306 = vmatpush2.msra.mxu0 0.0
    %307 = vmatprep.subr.mxu0 0.0
    %308 = vmatpush2.msra.mxu0 0.0
    %309 = vmatprep.subr.mxu0 0.0
    %310 = vmatpush2.msra.mxu0 0.0
    %311 = vmatprep.subr.mxu0 0.0
    %312 = vmatpush2.msra.mxu0 0.0
    %313 = vmatprep.subr.mxu0 0.0
    %314 = vmatpush2.msra.mxu0 0.0
    %315 = vmatprep.subr.mxu0 0.0
    %316 = vmatpush2.msra.mxu0 0.0
    %317 = vmatprep.subr.mxu0 0.0
    %318 = vmatpush2.msra.mxu0 0.0
    %319 = vmatprep.subr.mxu0 0.0
    %320 = vmatpush2.msra.mxu0 0.0
    %321 = vmatprep.subr.mxu0 0.0
    %322 = vmatpush2.msra.mxu0 0.0
    %323 = vmatprep.subr.mxu0 0.0
    %324 = vmatpush2.msra.mxu0 0.0
    %325 = vmatprep.subr.mxu0 0.0
    %326 = vmatpush2.msra.mxu0 0.0
    %327 = vmatprep.subr.mxu0 0.0
    %328 = vmatpush2.msra.mxu0 0.0
    %329 = vmatprep.subr.mxu0 0.0
    %330 = vmatpush2.msra.mxu0 0.0
    %331 = vmatprep.subr.mxu0 0.0
    %332 = vmatpush2.msra.mxu0 0.0
    %333 = vmatprep.mubr.f32.mxu0 0.0
    %334 = vmatmul.mubr.f32.gmra.mxu0 %v267
    %v335 = vpop.f32.mrf.mxu0
    %v336 = vadd.f32 %v262, %v335
    %v337 = vpop.f32.mrf.mxu0
    %338 = vdwg.mxu0
    %v339 = vld [vmem:[%s6] sm:$0x1]
    %v341 = vlaneseq
    %v342 = vshrl.u32 %v341, 7
    %v343 = vsub.s32 0, %v342
    %v344 = vrot.slane %v339, %v343
    %v346 = vadd.f32 %v336, %v344
    %347 = vmax.xlane.f32.xlu0 %v346
    %v348 = vpop.xlane.xlu0 %347
    %v349 = vsub.f32 %v346, %v348
    %v350 = vmul.f32 %v349, 1.442695
    %v351 = vpow.pop %v350
    %352 = vadd.xlane.f32.xlu0 %v351
    %v353 = vpop.xlane.xlu0 %352
    %v354 = vrcp.pop %v353
    %v355 = vmul.f32 %v351, %v354
    %356 = vst [vmem:[#allocation11] sm:$0xff] %v355
    // Predicated region
    $region50: #{tpu_custom_call.1} parent=1 // pred_check
      _
    $region51: #{tpu_custom_call.1} parent=1 // pred_check_branch
      %358 = sbr.rel (0) target = $region53
    $region52: #{tpu_custom_call.1} parent=1 // pred_region
      %s360 = ssub.s32 128, 128
      %361 = vsyncadd [#allocation4], %s360
      %s363 = sshll.u32 [#allocation11], 4
      %s364 = int_to_ptr.vmem [resolvable:$true] %s363
      %366 = dma.vmem_to_hbm [thread:$0]  %s364, 128, %s7, [#allocation4]
    $region53: #{tpu_custom_call.1} parent=1 // pred_fallthru
      _
    // Predicated region
    $region54: #{tpu_custom_call.1} parent=1 // pred_check
      _
    $region55: #{tpu_custom_call.1} parent=1 // pred_check_branch
      %368 = sbr.rel (0) target = $region57
    $region56: #{tpu_custom_call.1} parent=1 // pred_region
      %369 = dma.done [#allocation4], 128
    $region57: #{tpu_custom_call.1} parent=1 // pred_fallthru
      _
    %370 = vsyncpa [#allocation3], 1
    %371 = vsyncpa [#allocation6], 1
    %372 = vsyncpa [#allocation9], 1
    %373 = vsyncpa [#allocation4], 1

</llo_original>
